<compile_context>
chip_gen: v7x
topology: tpu7x:2x2x1
jax: 0.10.0
libtpu: 0.0.40
codegen_flags: <defaults>
</compile_context>

<pallas_src>
import functools

import jax
import jax.numpy as jnp
from jax.experimental import pallas as pl
from jax.experimental.pallas import tpu as pltpu

_LANES = 128


def _round_up(x: int, m: int) -> int:
    return ((x + m - 1) // m) * m


def _make_iou_kernel(smooth: float):
    smooth = float(smooth)

    def iou_kernel(pred_ref, true_ref, out_ref, acc_ref):
        k = pl.program_id(1)

        @pl.when(k == 0)
        def _init():
            zero = jnp.float32(0.0)
            acc_ref[0] = zero  # intersection
            acc_ref[1] = zero  # sum(pred > 0.5)
            acc_ref[2] = zero  # sum(true)

        pred = pred_ref[...].astype(jnp.float32)  # (1, TILE_R, 128)
        true = true_ref[...].astype(jnp.float32)

        # clamp(pred, 1e-7, 1-1e-7) followed by `> 0.5` is just `pred > 0.5`.
        mask = pred > 0.5
        inter = jnp.sum(jnp.where(mask, true, 0.0))
        sum_pred = jnp.sum(mask.astype(jnp.float32))
        sum_true = jnp.sum(true)

        acc_ref[0] = acc_ref[0] + inter
        acc_ref[1] = acc_ref[1] + sum_pred
        acc_ref[2] = acc_ref[2] + sum_true

        @pl.when(k == pl.num_programs(1) - 1)
        def _finalize():
            i = acc_ref[0]
            union = acc_ref[1] + acc_ref[2] - i
            iou = (i + smooth) / (union + smooth)
            out_ref[...] = jnp.full(out_ref.shape, iou, dtype=jnp.float32)

    return iou_kernel


@functools.partial(jax.jit, static_argnames=("smooth", "tile_rows"))
def sigmoid_iou(pred, true, smooth: float = 1.0, tile_rows: int = 2048):
    """Pallas TPU implementation of the `sigmoid` IoU metric module."""
    bs = pred.shape[0]
    pred2d = pred.reshape(bs, -1)  # keep native dtype: no HBM-doubling upcast
    true2d = true.reshape(bs, -1)
    n = pred2d.shape[1]

    # Lane-dense layout: (B, rows, 128); rows padded so TILE_R divides them.
    rows = pl.cdiv(n, _LANES)
    tile_r = min(int(tile_rows), _round_up(rows, 8))
    rows_padded = _round_up(rows, tile_r)
    n_padded = rows_padded * _LANES
    if n_padded != n:
        # Zero padding is neutral: pads contribute nothing to any of the sums.
        pad = n_padded - n
        pred2d = jnp.pad(pred2d, ((0, 0), (0, pad)))
        true2d = jnp.pad(true2d, ((0, 0), (0, pad)))
    pred3d = pred2d.reshape(bs, rows_padded, _LANES)
    true3d = true2d.reshape(bs, rows_padded, _LANES)
    num_k = rows_padded // tile_r

    out = pl.pallas_call(
        _make_iou_kernel(float(smooth)),
        out_shape=jax.ShapeDtypeStruct((bs, 1, _LANES), jnp.float32),
        grid_spec=pltpu.PrefetchScalarGridSpec(
            num_scalar_prefetch=0,
            grid=(bs, num_k),
            in_specs=[
                pl.BlockSpec((1, tile_r, _LANES), lambda b, k: (b, k, 0)),
                pl.BlockSpec((1, tile_r, _LANES), lambda b, k: (b, k, 0)),
            ],
            out_specs=pl.BlockSpec((1, 1, _LANES), lambda b, k: (b, 0, 0)),
            scratch_shapes=[pltpu.SMEM((3,), jnp.float32)],
        ),
        compiler_params=pltpu.CompilerParams(
            dimension_semantics=("parallel", "arbitrary"),
        ),
    )(pred3d, true3d)

    per_batch_iou = out[:, 0, 0]  # (B,)
    return jnp.mean(per_batch_iou)


if __name__ == "__main__":
    key = jax.random.PRNGKey(0)
    k1, k2 = jax.random.split(key)

    B, C, H, W = 2, 4, 16, 16
    # pred: probabilities in (0, 1); true: binary mask
    # TODO(synk): module is named `sigmoid` but (like the PyTorch reference)
    # never applies a sigmoid; it thresholds pred directly at 0.5.
    pred = jax.random.uniform(k1, (B, C, H, W), dtype=jnp.float32)
    true = (jax.random.uniform(k2, (B, C, H, W), dtype=jnp.float32) > 0.5).astype(
        jnp.float32
    )

    result = sigmoid_iou(pred, true, smooth=1.0)
    result = jax.block_until_ready(result)

    # pure-JAX reference check
    p2 = (jnp.clip(pred.reshape(B, -1), 1e-7, 1 - 1e-7) > 0.5).astype(jnp.float32)
    t2 = true.reshape(B, -1)
    inter = jnp.sum(p2 * t2, axis=1)
    union = jnp.sum(p2 + t2, axis=1) - inter
    ref = jnp.mean((inter + 1.0) / (union + 1.0))
    assert jnp.allclose(result, ref, rtol=1e-5, atol=1e-6), (result, ref)

    print("KERNEL_OK")
</pallas_src>

<mosaic_0001>
module attributes {stable_mosaic.version = 11 : i64} {
  func.func @iou_kernel(%arg0: i32, %arg1: i32, %arg2: memref<1x8x128xf32, #tpu.memory_space<vmem>>, %arg3: memref<1x8x128xf32, #tpu.memory_space<vmem>>, %arg4: memref<1x1x128xf32, #tpu.memory_space<vmem>>, %arg5: memref<3xf32, #tpu.memory_space<smem>>) attributes {dimension_semantics = [#tpu.dimension_semantics<parallel>, #tpu.dimension_semantics<arbitrary>], iteration_bounds = array<i64: 2, 1>, scalar_prefetch = 0 : i64, scratch_operands = 1 : i64, tpu.core_type = #tpu.core_type<tc>, window_params = [{transform_indices = @transform_0, window_bounds = array<i64: 1, 8, 128>}, {transform_indices = @transform_1, window_bounds = array<i64: 1, 8, 128>}, {transform_indices = @transform_2, window_bounds = array<i64: 1, 1, 128>}]} {
    %c0_i32 = arith.constant 0 : i32
    %0 = arith.cmpi eq, %arg1, %c0_i32 : i32
    %1 = arith.extui %0 : i1 to i32
    %c0_i32_0 = arith.constant 0 : i32
    %2 = arith.cmpi ne, %1, %c0_i32_0 : i32
    scf.if %2 {
      %cst_16 = arith.constant 0.000000e+00 : f32
      %c0_17 = arith.constant 0 : index
      %35 = memref.load %arg5[%c0_17] : memref<3xf32, #tpu.memory_space<smem>>
      memref.store %cst_16, %arg5[%c0_17] : memref<3xf32, #tpu.memory_space<smem>>
      %cst_18 = arith.constant 0.000000e+00 : f32
      %c1_19 = arith.constant 1 : index
      %36 = memref.load %arg5[%c1_19] : memref<3xf32, #tpu.memory_space<smem>>
      memref.store %cst_18, %arg5[%c1_19] : memref<3xf32, #tpu.memory_space<smem>>
      %cst_20 = arith.constant 0.000000e+00 : f32
      %c2_21 = arith.constant 2 : index
      %37 = memref.load %arg5[%c2_21] : memref<3xf32, #tpu.memory_space<smem>>
      memref.store %cst_20, %arg5[%c2_21] : memref<3xf32, #tpu.memory_space<smem>>
    } else {
    }
    %c0 = arith.constant 0 : index
    %c0_1 = arith.constant 0 : index
    %c0_2 = arith.constant 0 : index
    %3 = vector.load %arg2[%c0, %c0_1, %c0_2] : memref<1x8x128xf32, #tpu.memory_space<vmem>>, vector<1x8x128xf32>
    %c0_3 = arith.constant 0 : index
    %c0_4 = arith.constant 0 : index
    %c0_5 = arith.constant 0 : index
    %4 = vector.load %arg3[%c0_3, %c0_4, %c0_5] : memref<1x8x128xf32, #tpu.memory_space<vmem>>, vector<1x8x128xf32>
    %cst = arith.constant 5.000000e-01 : f32
    %5 = vector.broadcast %cst : f32 to vector<1x8x128xf32>
    %6 = arith.cmpf ogt, %3, %5 : vector<1x8x128xf32>
    %cst_6 = arith.constant 0.000000e+00 : f32
    %7 = vector.broadcast %cst_6 : f32 to vector<1x8x128xf32>
    %8 = arith.select %6, %4, %7 : vector<1x8x128xi1>, vector<1x8x128xf32>
    %9 = vector.shape_cast %8 : vector<1x8x128xf32> to vector<1x1x8x128xf32>
    %cst_7 = arith.constant dense<0.000000e+00> : vector<1xf32>
    %10 = vector.multi_reduction <add>, %9, %cst_7 [1, 2, 3] : vector<1x1x8x128xf32> to vector<1xf32>
    %11 = vector.shape_cast %10 : vector<1xf32> to vector<1x1x1x1xf32>
    %12 = vector.extract %11[0, 0, 0, 0] : f32 from vector<1x1x1x1xf32>
    %13 = arith.extui %6 : vector<1x8x128xi1> to vector<1x8x128xi32>
    %14 = arith.sitofp %13 : vector<1x8x128xi32> to vector<1x8x128xf32>
    %15 = vector.shape_cast %14 : vector<1x8x128xf32> to vector<1x1x8x128xf32>
    %cst_8 = arith.constant dense<0.000000e+00> : vector<1xf32>
    %16 = vector.multi_reduction <add>, %15, %cst_8 [1, 2, 3] : vector<1x1x8x128xf32> to vector<1xf32>
    %17 = vector.shape_cast %16 : vector<1xf32> to vector<1x1x1x1xf32>
    %18 = vector.extract %17[0, 0, 0, 0] : f32 from vector<1x1x1x1xf32>
    %19 = vector.shape_cast %4 : vector<1x8x128xf32> to vector<1x1x8x128xf32>
    %cst_9 = arith.constant dense<0.000000e+00> : vector<1xf32>
    %20 = vector.multi_reduction <add>, %19, %cst_9 [1, 2, 3] : vector<1x1x8x128xf32> to vector<1xf32>
    %21 = vector.shape_cast %20 : vector<1xf32> to vector<1x1x1x1xf32>
    %22 = vector.extract %21[0, 0, 0, 0] : f32 from vector<1x1x1x1xf32>
    %c0_10 = arith.constant 0 : index
    %23 = memref.load %arg5[%c0_10] : memref<3xf32, #tpu.memory_space<smem>>
    %24 = arith.addf %23, %12 : f32
    %c0_11 = arith.constant 0 : index
    %25 = memref.load %arg5[%c0_11] : memref<3xf32, #tpu.memory_space<smem>>
    memref.store %24, %arg5[%c0_11] : memref<3xf32, #tpu.memory_space<smem>>
    %c1 = arith.constant 1 : index
    %26 = memref.load %arg5[%c1] : memref<3xf32, #tpu.memory_space<smem>>
    %27 = arith.addf %26, %18 : f32
    %c1_12 = arith.constant 1 : index
    %28 = memref.load %arg5[%c1_12] : memref<3xf32, #tpu.memory_space<smem>>
    memref.store %27, %arg5[%c1_12] : memref<3xf32, #tpu.memory_space<smem>>
    %c2 = arith.constant 2 : index
    %29 = memref.load %arg5[%c2] : memref<3xf32, #tpu.memory_space<smem>>
    %30 = arith.addf %29, %22 : f32
    %c2_13 = arith.constant 2 : index
    %31 = memref.load %arg5[%c2_13] : memref<3xf32, #tpu.memory_space<smem>>
    memref.store %30, %arg5[%c2_13] : memref<3xf32, #tpu.memory_space<smem>>
    %c0_i32_14 = arith.constant 0 : i32
    %32 = arith.cmpi eq, %arg1, %c0_i32_14 : i32
    %33 = arith.extui %32 : i1 to i32
    %c0_i32_15 = arith.constant 0 : i32
    %34 = arith.cmpi ne, %33, %c0_i32_15 : i32
    scf.if %34 {
      %c0_16 = arith.constant 0 : index
      %35 = memref.load %arg5[%c0_16] : memref<3xf32, #tpu.memory_space<smem>>
      %c1_17 = arith.constant 1 : index
      %36 = memref.load %arg5[%c1_17] : memref<3xf32, #tpu.memory_space<smem>>
      %c2_18 = arith.constant 2 : index
      %37 = memref.load %arg5[%c2_18] : memref<3xf32, #tpu.memory_space<smem>>
      %38 = arith.addf %36, %37 : f32
      %39 = arith.subf %38, %35 : f32
      %cst_19 = arith.constant 1.000000e+00 : f32
      %40 = arith.addf %35, %cst_19 : f32
      %cst_20 = arith.constant 1.000000e+00 : f32
      %41 = arith.addf %39, %cst_20 : f32
      %42 = arith.divf %40, %41 : f32
      %43 = vector.broadcast %42 : f32 to vector<1x1x128xf32>
      %c0_21 = arith.constant 0 : index
      %c0_22 = arith.constant 0 : index
      %c0_23 = arith.constant 0 : index
      %44 = vector.load %arg4[%c0_21, %c0_22, %c0_23] : memref<1x1x128xf32, #tpu.memory_space<vmem>>, vector<1x1x128xf32>
      tpu.vector_store %arg4[%c0_21, %c0_22, %c0_23], %43 {strides = array<i32>} : memref<1x1x128xf32, #tpu.memory_space<vmem>>, vector<1x1x128xf32>,
    } else {
    }
    return
  }
  func.func @transform_0(%arg0: i32, %arg1: i32) -> (i32, i32, i32) {
    %c0_i32 = arith.constant 0 : i32
    %c0_i32_0 = arith.constant 0 : i32
    return %arg0, %arg1, %c0_i32 : i32, i32, i32
  }
  func.func @transform_1(%arg0: i32, %arg1: i32) -> (i32, i32, i32) {
    %c0_i32 = arith.constant 0 : i32
    %c0_i32_0 = arith.constant 0 : i32
    return %arg0, %arg1, %c0_i32 : i32, i32, i32
  }
  func.func @transform_2(%arg0: i32, %arg1: i32) -> (i32, i32, i32) {
    %c0_i32 = arith.constant 0 : i32
    %c0_i32_0 = arith.constant 0 : i32
    %c0_i32_1 = arith.constant 0 : i32
    return %arg0, %c0_i32, %c0_i32_0 : i32, i32, i32
  }
}

</mosaic_0001>

<llo_original>
// kernel: sigmoid_iou.1
$region0: #{sigmoid_iou.1}
  #allocation0 [shape = 'u32[]', space=smem, size = 0x4, offset = 0x4, fixed_abs, tag = 'smem constant byte address 0x4 - core index']
  #allocation1 [shape = 'u32[144,128]{1,0:T(1,128)}', space=vmem, size = 0x12000, scoped, tag = 'internal scratch']
  #allocation2 [shape = 'f32[3]{0:T(128)}', space=smem, size = 0x200, scoped, tag = 'scratch operand']
  %s0 = inlined_call_operand.vmem [shape: f32[2,8,128], index: 0, kind: input, shape index: {}]
  %s1 = inlined_call_operand.vmem [shape: f32[2,8,128], index: 1, kind: input, shape index: {}]
  %s2 = inlined_call_operand.vmem [shape: f32[2,1,128], index: 2, kind: output, shape index: {}]
  %s3 = sld [smem:[#allocation0]]
  $region49: #{sigmoid_iou.1} parent=0
    _
  %s5 = ssub.s32 1, %s3
  %s6 = scalar_select 0, %s5, %s3
  loop: start=0, step=1, limit=4
  $region2: #{sigmoid_iou.1} parent=0 // loop_pre_header
    _
  $region3: #{sigmoid_iou.1} parent=0 // loop_header
    %s8 = sphi 0, %s12
    %p9 = scmp.ge.s32.totalorder %s8, 4
    %s15 = sphi 0, %s27
    %s16 = sphi 0, %s23
    %s17 = sphi 0, %s15
    %s18 = sphi 0, %s16
    %s19 = sphi 0, %s17
    %s20 = sphi 0, %s18
    %s32 = sphi 0, %s34
    %s35 = sphi 0, %s32
    %s36 = sphi 0, %s35
    %s52 = sphi 0, %s36
    %s60 = sphi 0, %s62
    %s63 = sphi 0, %s60
    %s64 = sphi 0, %s63
    %s80 = sphi 0, %s64
    %s86 = sphi 0, %s88
    %s89 = sphi 0, %s86
    %s90 = sphi 0, %s89
    %s106 = sphi 0, %s90
  $region4: #{sigmoid_iou.1} parent=0 // loop_header_branch
    %11 = sbr.rel (%p9) target = $region8
  $region5: #{sigmoid_iou.1} parent=0 // loop_body
    %s13 = ssub.s32 %s8, 1
    %s14 = ssub.s32 %s8, 2
    %s21 = sadd.s32 1, %s16
    %p22 = scmp.ge.s32.totalorder %s21, 1
    %s23 = scalar_select %p22, 0, %s21
    %s24 = sadd.s32 1, %s15
    %s25 = scalar_select %p22, %s24, %s15
    %p26 = scmp.ge.s32.totalorder %s25, 2
    %s27 = scalar_select %p26, 0, %s25
    %s28 = ssub.s32 %s15, %s27
    %s29 = ssub.s32 %s16, %s23
    %s30 = sor.u32 %s28, %s29
    %p31 = scmp.eq.s32.totalorder %s30, 0
    %s33 = sadd.s32 %s32, 1
    %s34 = scalar_select %p31, %s32, %s33
    %p37 = pneg %p31
    %p38 = scmp.eq.s32.totalorder %s8, 1
    %p39 = por %p37, %p38
    %p40 = scmp.ne.s32.totalorder %s32, %s35
    %p41 = scmp.eq.s32.totalorder %s8, 0
    %p42 = por %p40, %p41
    %p43 = scmp.ne.s32.totalorder %s32, %s35
    %p44 = scmp.eq.s32.totalorder %s13, 1
    %p45 = por %p43, %p44
    %p46 = scmp.ne.s32.totalorder %s35, %s36
    %p47 = scmp.eq.s32.totalorder %s13, 0
    %p48 = por %p46, %p47
    %p49 = scmp.ne.s32.totalorder %s35, %s36
    %p50 = scmp.eq.s32.totalorder %s14, 1
    %p51 = por %p49, %p50
    %p53 = scmp.ne.s32.totalorder %s36, %s52
    %p54 = scmp.eq.s32.totalorder %s14, 0
    %p55 = por %p53, %p54
    %s56 = ssub.s32 %s15, %s27
    %s57 = ssub.s32 %s16, %s23
    %s58 = sor.u32 %s56, %s57
    %p59 = scmp.eq.s32.totalorder %s58, 0
    %s61 = sadd.s32 %s60, 1
    %s62 = scalar_select %p59, %s60, %s61
    %p65 = pneg %p59
    %p66 = scmp.eq.s32.totalorder %s8, 1
    %p67 = por %p65, %p66
    %p68 = scmp.ne.s32.totalorder %s60, %s63
    %p69 = scmp.eq.s32.totalorder %s8, 0
    %p70 = por %p68, %p69
    %p71 = scmp.ne.s32.totalorder %s60, %s63
    %p72 = scmp.eq.s32.totalorder %s13, 1
    %p73 = por %p71, %p72
    %p74 = scmp.ne.s32.totalorder %s63, %s64
    %p75 = scmp.eq.s32.totalorder %s13, 0
    %p76 = por %p74, %p75
    %p77 = scmp.ne.s32.totalorder %s63, %s64
    %p78 = scmp.eq.s32.totalorder %s14, 1
    %p79 = por %p77, %p78
    %p81 = scmp.ne.s32.totalorder %s64, %s80
    %p82 = scmp.eq.s32.totalorder %s14, 0
    %p83 = por %p81, %p82
    %s84 = ssub.s32 %s15, %s27
    %p85 = scmp.eq.s32.totalorder %s84, 0
    %s87 = sadd.s32 %s86, 1
    %s88 = scalar_select %p85, %s86, %s87
    %p91 = pneg %p85
    %p92 = scmp.eq.s32.totalorder %s8, 1
    %p93 = por %p91, %p92
    %p94 = scmp.ne.s32.totalorder %s86, %s89
    %p95 = scmp.eq.s32.totalorder %s8, 0
    %p96 = por %p94, %p95
    %p97 = scmp.ne.s32.totalorder %s86, %s89
    %p98 = scmp.eq.s32.totalorder %s13, 1
    %p99 = por %p97, %p98
    %p100 = scmp.ne.s32.totalorder %s89, %s90
    %p101 = scmp.eq.s32.totalorder %s13, 0
    %p102 = por %p100, %p101
    %p103 = scmp.ne.s32.totalorder %s89, %s90
    %p104 = scmp.eq.s32.totalorder %s14, 1
    %p105 = por %p103, %p104
    %p107 = scmp.ne.s32.totalorder %s90, %s106
    %p108 = scmp.eq.s32.totalorder %s14, 0
    %p109 = por %p107, %p108
    %p110 = scmp.le.s32.totalorder 1, %s8
    %p111 = scmp.lt.s32.totalorder %s8, 3
    %p112 = pnand %p110, %p111
    %p113 = pneg %p112
    // Predicated region
    $region9: #{sigmoid_iou.1} parent=5 // pred_check
      _
    $region10: #{sigmoid_iou.1} parent=5 // pred_check_branch
      %115 = sbr.rel (%p112) target = $region12
    $region11: #{sigmoid_iou.1} parent=5 // pred_region
      %s116 = ssub.s32 %s8, 1
    $region12: #{sigmoid_iou.1} parent=5 // pred_fallthru
      _
    %p117 = scmp.lt.s32.totalorder %s8, 2
    // Predicated region
    $region13: #{sigmoid_iou.1} parent=5 // pred_check
      %p118 = pneg %p117
    $region14: #{sigmoid_iou.1} parent=5 // pred_check_branch
      %120 = sbr.rel (%p118) target = $region16
    $region15: #{sigmoid_iou.1} parent=5 // pred_region
      // Predicated region
      $region17: #{sigmoid_iou.1} parent=15 // pred_check
        %p121 = pneg %p42
      $region18: #{sigmoid_iou.1} parent=15 // pred_check_branch
        %123 = sbr.rel (%p121) target = $region20
      $region19: #{sigmoid_iou.1} parent=15 // pred_region
        %p124 = scmp.lt.s32.totalorder %s15, 1
        %s125 = scalar_select %p124, %s15, 1
        %p126 = scmp.lt.s32.totalorder %s16, 0
        %s127 = scalar_select %p126, %s16, 0
        %s128 = sadd.s32 %s127, %s125
        %s129 = smul.addr %s128, 8
        %s130 = scalar_lea.vmem %s0, %s129
      $region20: #{sigmoid_iou.1} parent=15 // pred_fallthru
        _
      // Predicated region
      $region21: #{sigmoid_iou.1} parent=15 // pred_check
        %p131 = pneg %p70
      $region22: #{sigmoid_iou.1} parent=15 // pred_check_branch
        %133 = sbr.rel (%p131) target = $region24
      $region23: #{sigmoid_iou.1} parent=15 // pred_region
        %p134 = scmp.lt.s32.totalorder %s15, 1
        %s135 = scalar_select %p134, %s15, 1
        %p136 = scmp.lt.s32.totalorder %s16, 0
        %s137 = scalar_select %p136, %s16, 0
        %s138 = sadd.s32 %s137, %s135
        %s139 = smul.addr %s138, 8
        %s140 = scalar_lea.vmem %s1, %s139
      $region24: #{sigmoid_iou.1} parent=15 // pred_fallthru
        _
    $region16: #{sigmoid_iou.1} parent=5 // pred_fallthru
      _
    %p141 = scmp.le.s32.totalorder 1, %s8
    %p142 = scmp.lt.s32.totalorder %s8, 3
    %p143 = pnand %p141, %p142
    %p144 = pneg %p143
    // Predicated region
    $region25: #{sigmoid_iou.1} parent=5 // pred_check
      _
    $region26: #{sigmoid_iou.1} parent=5 // pred_check_branch
      %146 = sbr.rel (%p143) target = $region28
    $region27: #{sigmoid_iou.1} parent=5 // pred_region
      %s147 = ssub.s32 %s8, 1
      %p148 = scmp.lt.s32.totalorder %s17, 1
      %s149 = scalar_select %p148, %s17, 1
      %p150 = scmp.lt.s32.totalorder %s18, 0
      %s151 = scalar_select %p150, %s18, 0
      %s152 = sadd.s32 %s151, %s149
      %s153 = smul.addr %s152, 8
      %s154 = scalar_lea.vmem %s0, %s153
      %p155 = pneg %p48
      %p156 = pneg %p45
      %p157 = scmp.lt.s32.totalorder %s17, 1
      %s158 = scalar_select %p157, %s17, 1
      %p159 = scmp.lt.s32.totalorder %s18, 0
      %s160 = scalar_select %p159, %s18, 0
      %s161 = sadd.s32 %s160, %s158
      %s162 = smul.addr %s161, 8
      %s163 = scalar_lea.vmem %s1, %s162
      %p164 = pneg %p76
      %p165 = pneg %p73
      %p166 = pneg %p102
      %p167 = pneg %p99
      %p168 = scmp.lt.s32.totalorder %s17, 1
      %s169 = scalar_select %p168, %s17, 1
      %s170 = scalar_lea.vmem %s2, %s169
      %p171 = scmp.lt.s32.totalorder %s17, 1
      %s172 = scalar_select %p171, %s17, 1
      %p173 = scmp.lt.s32.totalorder %s18, 0
      %s174 = scalar_select %p173, %s18, 0
      %s175 = sadd.s32 %s174, %s172
      %s176 = smul.addr %s175, 8
      %s177 = scalar_lea.vmem %s0, %s176
      %p178 = scmp.lt.s32.totalorder %s17, 1
      %s179 = scalar_select %p178, %s17, 1
      %p180 = scmp.lt.s32.totalorder %s18, 0
      %s181 = scalar_select %p180, %s18, 0
      %s182 = sadd.s32 %s181, %s179
      %s183 = smul.addr %s182, 8
      %s184 = scalar_lea.vmem %s1, %s183
      %p185 = scmp.lt.s32.totalorder %s17, 1
      %s186 = scalar_select %p185, %s17, 1
      %s187 = scalar_lea.vmem %s2, %s186
      %p188 = scmp.eq.s32.totalorder %s18, 0
      // Predicated region
      $region29: #{sigmoid_iou.1} parent=27 // pred_check
        %p189 = pneg %p188
      $region30: #{sigmoid_iou.1} parent=27 // pred_check_branch
        %191 = sbr.rel (%p189) target = $region32
      $region31: #{sigmoid_iou.1} parent=27 // pred_region
        %s192 = scalar_lea.smem [#allocation2], 0
        %193 = sst [smem:[%s192]] 0.0
        %s194 = scalar_lea.smem [#allocation2], 1
        %195 = sst [smem:[%s194]] 0.0
        %s196 = scalar_lea.smem [#allocation2], 2
        %197 = sst [smem:[%s196]] 0.0
      $region32: #{sigmoid_iou.1} parent=27 // pred_fallthru
        _
      %v198 = vld [vmem:[%s177] sm:$0xff]
      %v199 = vld [vmem:[%s184] sm:$0xff]
      %vm200 = vcmp.gt.f32.partialorder %v198, 0.5
      %v201 = vsel %vm200, %v199, 0.0
      %202 = vadd.xlane.f32.xlu0 %v201
      %v203 = vpop.xlane.xlu0 %202
      %v204 = vrot.slane %v203, 4
      %v205 = vadd.f32 %v203, %v204
      %v206 = vrot.slane %v205, 2
      %v207 = vadd.f32 %v205, %v206
      %v208 = vrot.slane %v207, 1
      %v209 = vadd.f32 %v207, %v208
      %s210 = vtos %v209
      %v211 = vsel %vm200, 1, 0
      %v212 = vcvt.s32.f32 %v211
      %213 = vadd.xlane.f32.xlu0 %v212
      %v214 = vpop.xlane.xlu0 %213
      %v215 = vrot.slane %v214, 4
      %v216 = vadd.f32 %v214, %v215
      %v217 = vrot.slane %v216, 2
      %v218 = vadd.f32 %v216, %v217
      %v219 = vrot.slane %v218, 1
      %v220 = vadd.f32 %v218, %v219
      %s221 = vtos %v220
      %222 = vadd.xlane.f32.xlu0 %v199
      %v223 = vpop.xlane.xlu0 %222
      %v224 = vrot.slane %v223, 4
      %v225 = vadd.f32 %v223, %v224
      %v226 = vrot.slane %v225, 2
      %v227 = vadd.f32 %v225, %v226
      %v228 = vrot.slane %v227, 1
      %v229 = vadd.f32 %v227, %v228
      %s230 = vtos %v229
      %s231 = sld [smem:[#allocation2]]
      %s232 = sadd.f32 %s231, %s210
      %s233 = scalar_lea.smem [#allocation2], 0
      %234 = sst [smem:[%s233]] %s232
      %s235 = sld [smem:[#allocation2 + $0x1]]
      %s236 = sadd.f32 %s235, %s221
      %s237 = scalar_lea.smem [#allocation2], 1
      %238 = sst [smem:[%s237]] %s236
      %s239 = sld [smem:[#allocation2 + $0x2]]
      %s240 = sadd.f32 %s239, %s230
      %s241 = scalar_lea.smem [#allocation2], 2
      %242 = sst [smem:[%s241]] %s240
      // Predicated region
      $region33: #{sigmoid_iou.1} parent=27 // pred_check
        %p243 = pneg %p188
      $region34: #{sigmoid_iou.1} parent=27 // pred_check_branch
        %245 = sbr.rel (%p243) target = $region36
      $region35: #{sigmoid_iou.1} parent=27 // pred_region
        %s246 = sld [smem:[#allocation2]]
        %s247 = sld [smem:[#allocation2 + $0x1]]
        %s248 = sld [smem:[#allocation2 + $0x2]]
        %s249 = sadd.f32 %s247, %s248
        %s250 = ssub.f32 %s249, %s246
        %s251 = sadd.f32 %s246, 1.0
        %s252 = sadd.f32 %s250, 1.0
        %v253 = vstv %s252
        %v254 = vrcp.pop %v253
        %s255 = vtos %v254
        %s256 = smul.f32 %s251, %s255
        %v257 = vstv %s256
        %258 = vst [vmem:[%s187] sm:$0x1] %v257
      $region36: #{sigmoid_iou.1} parent=27 // pred_fallthru
        _
      %p259 = scmp.lt.s32.totalorder %s17, 1
      %s260 = scalar_select %p259, %s17, 1
      %s261 = scalar_lea.vmem %s2, %s260
      // Predicated region
      $region37: #{sigmoid_iou.1} parent=27 // pred_check
        %p262 = pneg %p99
      $region38: #{sigmoid_iou.1} parent=27 // pred_check_branch
        %264 = sbr.rel (%p262) target = $region40
      $region39: #{sigmoid_iou.1} parent=27 // pred_region
        _
      $region40: #{sigmoid_iou.1} parent=27 // pred_fallthru
        _
    $region28: #{sigmoid_iou.1} parent=5 // pred_fallthru
      _
    %p265 = scmp.le.s32.totalorder 2, %s8
    // Predicated region
    $region41: #{sigmoid_iou.1} parent=5 // pred_check
      %p266 = pneg %p265
    $region42: #{sigmoid_iou.1} parent=5 // pred_check_branch
      %268 = sbr.rel (%p266) target = $region44
    $region43: #{sigmoid_iou.1} parent=5 // pred_region
      %s269 = ssub.s32 %s8, 2
      // Predicated region
      $region45: #{sigmoid_iou.1} parent=43 // pred_check
        %p270 = pneg %p105
      $region46: #{sigmoid_iou.1} parent=43 // pred_check_branch
        %272 = sbr.rel (%p270) target = $region48
      $region47: #{sigmoid_iou.1} parent=43 // pred_region
        %p273 = scmp.lt.s32.totalorder %s19, 1
        %s274 = scalar_select %p273, %s19, 1
        %s275 = scalar_lea.vmem %s2, %s274
      $region48: #{sigmoid_iou.1} parent=43 // pred_fallthru
        _
    $region44: #{sigmoid_iou.1} parent=5 // pred_fallthru
      _
  $region6: #{sigmoid_iou.1} parent=0 // loop_footer
    %s12 = sadd.s32 1, %s8
  $region7: #{sigmoid_iou.1} parent=0 // loop_footer_branch
    %7 = sbr.rel target = $region3
  $region8: #{sigmoid_iou.1} parent=0 // loop_exit
    _

</llo_original>
